<compile_context>
chip_gen: v7x
topology: tpu7x:2x2x1
jax: 0.10.0
libtpu: 0.0.40
codegen_flags: <defaults>
</compile_context>

<pallas_src>
import functools
import math

import numpy as np

import jax
import jax.numpy as jnp
from jax.experimental import pallas as pl
from jax.experimental.pallas import tpu as pltpu

_LANES = 128
_SUBLANES = 8
_MAX_TILE_ROWS = 4096          # 4096 * 128 * 4 B = 2 MiB per f32 input tile
_STEP_OVERHEAD_S = 0.35e-6     # measured per-grid-step fixed cost
_HBM_BW_BYTES_PER_S = 1.0e12   # conservative streaming BW for the cost model
_NUM_SPLITS = 2                # row-tile split so both v7x TensorCores get work


def _round_up(x, m):
    return ((x + m - 1) // m) * m


def _cdiv(a, b):
    return (a + b - 1) // b


# --------------------------------------------------------------------------
# Kernel
# --------------------------------------------------------------------------
def _disc_adv_loss_kernel(row_ref, slot_ref, first_ref, valid_ref,
                          xhat_ref, x_ref, out_ref, *,
                          loss_type, tile_rows, t_per):
    """Grid = (n_splits, tiles_per_split).

    row_ref   : SMEM (n_splits*t_per,) int32  input block-row per grid step
    slot_ref  : SMEM (n_splits*t_per,) int32  output accumulator slot
    first_ref : SMEM (n_splits*t_per,) int32  1 -> zero the accumulator slot
    valid_ref : SMEM (n_splits*t_per,) int32  1 -> accumulate (0 = grid pad)
    xhat_ref  : VMEM (tile_rows, 128)  generator scores  (fake)
    x_ref     : VMEM (tile_rows, 128)  groundtruth scores (real)
    out_ref   : VMEM (1, 2, 8, 128) f32 [real_partial, fake_partial] slot,
                resident across the inner grid axis (accumulator).
    """
    t = pl.program_id(0) * t_per + pl.program_id(1)

    @pl.when(first_ref[t] == 1)
    def _init():
        out_ref[...] = jnp.zeros_like(out_ref)

    @pl.when(valid_ref[t] == 1)
    def _accumulate():
        x = x_ref[...].astype(jnp.float32)       # (tile_rows, 128)
        xh = xhat_ref[...].astype(jnp.float32)

        # Padding inside the tile is loss-neutral by construction (real pad=1,
        # fake pad=0/-1), so no iota/mask chain is needed here.
        if loss_type == "mse":
            real_c = (x - 1.0) * (x - 1.0)
            fake_c = xh * xh
        else:  # hinge
            real_c = -jnp.minimum(x - 1.0, 0.0)
            fake_c = -jnp.minimum(-xh - 1.0, 0.0)

        # Fold (tile_rows, 128) -> (8, 128) with vreg-wise VPU adds (no XLU
        # reduce in the kernel; the tiny cross-lane sum happens in JAX).
        nsub = tile_rows // _SUBLANES
        real_p = jnp.sum(real_c.reshape(nsub, _SUBLANES, _LANES), axis=0)
        fake_p = jnp.sum(fake_c.reshape(nsub, _SUBLANES, _LANES), axis=0)

        out_ref[0, 0] = out_ref[0, 0] + real_p
        out_ref[0, 1] = out_ref[0, 1] + fake_p


# --------------------------------------------------------------------------
# Wrapper helpers
# --------------------------------------------------------------------------
def _choose_tile_rows(row_counts, bytes_per_elem, max_tile_rows):
    """Compile-time tile-size pick: streamed bytes / BW + per-step overhead."""
    cands = []
    tr = _SUBLANES
    while tr < max_tile_rows:
        cands.append(tr)
        tr *= 2
    cands.append(max_tile_rows)

    best_tr, best_cost = cands[0], None
    for tr in cands:
        padded_rows = sum(_round_up(r, tr) for r in row_counts)
        n_tiles = padded_rows // tr
        cost = (padded_rows * _LANES * bytes_per_elem) / _HBM_BW_BYTES_PER_S \
            + n_tiles * _STEP_OVERHEAD_S
        if best_cost is None or cost < best_cost:
            best_tr, best_cost = tr, cost
    return best_tr


def _concat_lane_dense(tensors, dtype, pad_value, tile_rows):
    """Flatten + pad each tensor to a tile boundary, concat -> (rows, 128)."""
    chunks = []
    for t in tensors:
        flat = jnp.ravel(t).astype(dtype)
        n = flat.shape[0]
        rows = _round_up(_cdiv(n, _LANES), tile_rows)
        pad = rows * _LANES - n
        if pad:
            flat = jnp.pad(flat, (0, pad), constant_values=pad_value)
        chunks.append(flat.reshape(rows, _LANES))
    return chunks[0] if len(chunks) == 1 else jnp.concatenate(chunks, axis=0)


def _build_schedule(tiles_per_disc, num_splits):
    """Static (numpy) grid schedule: block rows, output slots, init/valid flags."""
    flat_disc = []
    for d, nt in enumerate(tiles_per_disc):
        flat_disc.extend([d] * nt)
    t_total = len(flat_disc)
    n_splits = max(1, min(num_splits, t_total))
    t_per = _cdiv(t_total, n_splits)

    row = np.zeros((n_splits, t_per), np.int32)
    slot = np.zeros((n_splits, t_per), np.int32)
    first = np.zeros((n_splits, t_per), np.int32)
    valid = np.zeros((n_splits, t_per), np.int32)
    slot_to_disc = []

    for s in range(n_splits):
        start, end = s * t_per, min((s + 1) * t_per, t_total)
        assert start < end, "schedule split must own at least one tile"
        cur_disc = -1
        for j in range(t_per):
            i = start + j
            if i < end:
                d = flat_disc[i]
                if d != cur_disc:
                    cur_disc = d
                    slot_to_disc.append(d)
                    first[s, j] = 1
                row[s, j] = i
                slot[s, j] = len(slot_to_disc) - 1
                valid[s, j] = 1
            else:
                # Grid padding: repeat the previous indices so the pipeline
                # keeps the resident buffers (no extra HBM fetch / writeback).
                row[s, j] = row[s, j - 1]
                slot[s, j] = slot[s, j - 1]

    return (row.reshape(-1), slot.reshape(-1), first.reshape(-1),
            valid.reshape(-1), np.asarray(slot_to_disc, np.int32),
            n_splits, t_per)


# --------------------------------------------------------------------------
# Pallas path
# --------------------------------------------------------------------------
def _pallas_loss(hats, reals, *, loss_type, average, max_tile_rows):
    """hats/reals: lists of score tensors (possibly heterogeneous shapes)."""
    D = len(hats)
    counts = [math.prod(h.shape) for h in hats]
    for h, r, c in zip(hats, reals, counts):
        assert math.prod(r.shape) == c, "score_hat/score element count mismatch"
        assert c > 0, "discriminator score tensors must be non-empty"

    # Keep the inputs' (possibly low) precision through HBM; cast to f32
    # inside the kernel. Streaming-bound on v5e/v6e -> fewer bytes matter.
    dtype_h = jnp.result_type(*[h.dtype for h in hats])
    dtype_r = jnp.result_type(*[r.dtype for r in reals])

    max_tile_rows = max(_SUBLANES,
                        _round_up(min(int(max_tile_rows), _MAX_TILE_ROWS),
                                  _SUBLANES))
    row_counts = [_cdiv(c, _LANES) for c in counts]
    bytes_per_elem = jnp.dtype(dtype_h).itemsize + jnp.dtype(dtype_r).itemsize
    tile_rows = _choose_tile_rows(row_counts, bytes_per_elem, max_tile_rows)

    # Loss-neutral padding => no in-kernel mask.
    #   real pad = 1.0 : mse (1-1)^2 = 0 ; hinge -min(1-1, 0) = 0
    #   fake pad = 0.0 (mse: 0^2 = 0)  /  -1.0 (hinge: -min(-(-1)-1, 0) = 0)
    real_pad = 1.0
    fake_pad = 0.0 if loss_type == "mse" else -1.0

    xh_cat = _concat_lane_dense(hats, dtype_h, fake_pad, tile_rows)
    xr_cat = _concat_lane_dense(reals, dtype_r, real_pad, tile_rows)

    tiles_per_disc = [_round_up(r, tile_rows) // tile_rows for r in row_counts]
    row, slot, first, valid, slot_to_disc, n_splits, t_per = _build_schedule(
        tiles_per_disc, _NUM_SPLITS)
    num_slots = int(slot_to_disc.shape[0])

    kernel = functools.partial(_disc_adv_loss_kernel, loss_type=loss_type,
                               tile_rows=tile_rows, t_per=t_per)

    def _in_index_map(s, j, row_r, slot_r, first_r, valid_r):
        return (row_r[s * t_per + j], 0)

    def _out_index_map(s, j, row_r, slot_r, first_r, valid_r):
        return (slot_r[s * t_per + j], 0, 0, 0)

    out = pl.pallas_call(
        kernel,
        out_shape=jax.ShapeDtypeStruct((num_slots, 2, _SUBLANES, _LANES),
                                       jnp.float32),
        grid_spec=pltpu.PrefetchScalarGridSpec(
            num_scalar_prefetch=4,
            grid=(n_splits, t_per),
            in_specs=[
                pl.BlockSpec((tile_rows, _LANES), _in_index_map),
                pl.BlockSpec((tile_rows, _LANES), _in_index_map),
            ],
            out_specs=pl.BlockSpec((1, 2, _SUBLANES, _LANES), _out_index_map),
        ),
        compiler_params=pltpu.CompilerParams(
            dimension_semantics=("parallel", "arbitrary")),
    )(jnp.asarray(row), jnp.asarray(slot), jnp.asarray(first),
      jnp.asarray(valid), xh_cat, xr_cat)

    # Tiny epilogue in plain JAX: cross-lane reduce, slot->disc scatter-add,
    # per-discriminator mean, discriminator averaging.
    slot_sums = jnp.sum(out, axis=(-2, -1))                        # (slots, 2)
    per_disc = jnp.zeros((D, 2), jnp.float32).at[
        jnp.asarray(slot_to_disc)].add(slot_sums)                  # (D, 2)
    means = per_disc / jnp.asarray(counts, jnp.float32)[:, None]   # (D, 2)
    real_loss = jnp.sum(means[:, 0])
    fake_loss = jnp.sum(means[:, 1])
    if average:
        real_loss = real_loss / jnp.float32(D)
        fake_loss = fake_loss / jnp.float32(D)
    return real_loss + fake_loss


# --------------------------------------------------------------------------
# Pure-JAX fast path (tiny inputs: Pallas launch overhead would dominate)
# --------------------------------------------------------------------------
def _small_jax_loss(hats, reals, *, loss_type, average):
    real_loss = jnp.float32(0.0)
    fake_loss = jnp.float32(0.0)
    for h, r in zip(hats, reals):
        h32 = h.astype(jnp.float32)
        r32 = r.astype(jnp.float32)
        if loss_type == "mse":
            real_loss = real_loss + jnp.mean((r32 - 1.0) ** 2)
            fake_loss = fake_loss + jnp.mean(h32 * h32)
        else:
            real_loss = real_loss - jnp.mean(jnp.minimum(r32 - 1.0, 0.0))
            fake_loss = fake_loss - jnp.mean(jnp.minimum(-h32 - 1.0, 0.0))
    if average:
        n = jnp.float32(len(hats))
        real_loss = real_loss / n
        fake_loss = fake_loss / n
    return real_loss + fake_loss


# --------------------------------------------------------------------------
# Public API (matches DiscriminatorAdversarialLoss.forward semantics)
# --------------------------------------------------------------------------
def discriminator_adversarial_loss(outputs_hat, outputs, *,
                                   average_by_discriminators=True,
                                   loss_type="mse",
                                   min_elements_for_pallas=1 << 16,
                                   max_tile_rows=_MAX_TILE_ROWS):
    """JAX/Pallas equivalent of DiscriminatorAdversarialLoss.forward."""
    assert loss_type in ("mse", "hinge"), f"{loss_type} is not supported."

    if isinstance(outputs, (tuple, list)):
        hats, reals = [], []
        for oh, o in zip(outputs_hat, outputs):
            if isinstance(oh, (tuple, list)):
                oh, o = oh[-1], o[-1]
            hats.append(oh)
            reals.append(o)
        average = average_by_discriminators
    else:
        hats, reals = [outputs_hat], [outputs]
        average = False  # single-tensor path in PyTorch never averages

    total_elems = sum(math.prod(h.shape) for h in hats)
    if total_elems < min_elements_for_pallas:
        return _small_jax_loss(hats, reals, loss_type=loss_type, average=average)
    return _pallas_loss(hats, reals, loss_type=loss_type, average=average,
                        max_tile_rows=max_tile_rows)


# --------------------------------------------------------------------------
# Pure-JAX reference (mirrors the PyTorch module exactly)
# --------------------------------------------------------------------------
def _reference_loss(outputs_hat, outputs, average_by_discriminators, loss_type):
    def real_crit(x):
        x = x.astype(jnp.float32)
        if loss_type == "mse":
            return jnp.mean((x - 1.0) ** 2)
        return -jnp.mean(jnp.minimum(x - 1.0, 0.0))

    def fake_crit(x):
        x = x.astype(jnp.float32)
        if loss_type == "mse":
            return jnp.mean(x * x)
        return -jnp.mean(jnp.minimum(-x - 1.0, 0.0))

    if isinstance(outputs, (tuple, list)):
        real_loss = 0.0
        fake_loss = 0.0
        for i, (oh, o) in enumerate(zip(outputs_hat, outputs)):
            if isinstance(oh, (tuple, list)):
                oh, o = oh[-1], o[-1]
            real_loss = real_loss + real_crit(o)
            fake_loss = fake_loss + fake_crit(oh)
        if average_by_discriminators:
            real_loss = real_loss / (i + 1)
            fake_loss = fake_loss / (i + 1)
    else:
        real_loss = real_crit(outputs)
        fake_loss = fake_crit(outputs_hat)
    return real_loss + fake_loss


if __name__ == "__main__":
    key = jax.random.PRNGKey(0)

    # Multi-scale discriminator scores (heterogeneous shapes, none a multiple
    # of 128) wrapped in the list-of-list structure the module accepts.
    score_shapes = [(2, 1, 12000), (2, 1, 760), (2, 1, 190)]
    keys = jax.random.split(key, 2 * len(score_shapes))

    outputs_hat, outputs = [], []
    for i, shp in enumerate(score_shapes):
        fmap = jnp.zeros((2, 4, 8), jnp.float32)  # intermediate fmap (unused)
        score_hat = jax.random.normal(keys[2 * i], shp, jnp.float32)
        score = jax.random.normal(keys[2 * i + 1], shp, jnp.float32)
        outputs_hat.append([fmap, score_hat])
        outputs.append([fmap, score])

    ok = True

    # 1) Force the Pallas path for both loss types (list-of-list inputs).
    for lt in ("mse", "hinge"):
        loss = discriminator_adversarial_loss(
            outputs_hat, outputs, average_by_discriminators=True,
            loss_type=lt, min_elements_for_pallas=0)
        loss = jax.block_until_ready(loss)
        ref = _reference_loss(outputs_hat, outputs, True, lt)
        ok = ok and bool(jnp.allclose(loss, ref, rtol=1e-4, atol=1e-5))

    # 2) Small tile cap -> multi-tile per-discriminator accumulation path.
    loss = discriminator_adversarial_loss(
        outputs_hat, outputs, average_by_discriminators=True,
        loss_type="hinge", min_elements_for_pallas=0, max_tile_rows=64)
    loss = jax.block_until_ready(loss)
    ref = _reference_loss(outputs_hat, outputs, True, "hinge")
    ok = ok and bool(jnp.allclose(loss, ref, rtol=1e-4, atol=1e-5))

    # 3) bf16 scores: streamed at half the HBM bytes, cast to f32 in-kernel.
    outputs_hat_bf = [[f, s.astype(jnp.bfloat16)] for f, s in outputs_hat]
    outputs_bf = [[f, s.astype(jnp.bfloat16)] for f, s in outputs]
    loss = discriminator_adversarial_loss(
        outputs_hat_bf, outputs_bf, average_by_discriminators=True,
        loss_type="mse", min_elements_for_pallas=0)
    loss = jax.block_until_ready(loss)
    ref = _reference_loss(outputs_hat_bf, outputs_bf, True, "mse")
    ok = ok and bool(jnp.allclose(loss, ref, rtol=2e-3, atol=1e-3))

    # 4) Single-tensor path (D = 1), forced through the Pallas kernel.
    s_hat, s_real = outputs_hat[0][-1], outputs[0][-1]
    loss1 = discriminator_adversarial_loss(
        s_hat, s_real, loss_type="hinge", min_elements_for_pallas=0)
    loss1 = jax.block_until_ready(loss1)
    ref1 = _reference_loss(s_hat, s_real, True, "hinge")
    ok = ok and bool(jnp.allclose(loss1, ref1, rtol=1e-4, atol=1e-5))

    # 5) Tiny input with the default threshold -> fused pure-JAX fast path.
    t_hat, t_real = outputs_hat[2][-1], outputs[2][-1]
    loss2 = discriminator_adversarial_loss(t_hat, t_real, loss_type="mse")
    loss2 = jax.block_until_ready(loss2)
    ref2 = _reference_loss(t_hat, t_real, True, "mse")
    ok = ok and bool(jnp.allclose(loss2, ref2, rtol=1e-4, atol=1e-5))

    if ok:
        print("KERNEL_OK")
    else:
        raise SystemExit("mismatch vs reference")
</pallas_src>

<mosaic_0001>
module attributes {stable_mosaic.version = 11 : i64} {
  func.func @_disc_adv_loss_kernel(%arg0: i32, %arg1: i32, %arg2: memref<4xi32, #tpu.memory_space<smem>>, %arg3: memref<4xi32, #tpu.memory_space<smem>>, %arg4: memref<4xi32, #tpu.memory_space<smem>>, %arg5: memref<4xi32, #tpu.memory_space<smem>>, %arg6: memref<256x128xf32, #tpu.memory_space<vmem>>, %arg7: memref<256x128xf32, #tpu.memory_space<vmem>>, %arg8: memref<1x2x8x128xf32, #tpu.memory_space<vmem>>) attributes {dimension_semantics = [#tpu.dimension_semantics<parallel>, #tpu.dimension_semantics<arbitrary>], iteration_bounds = array<i64: 2, 2>, scalar_prefetch = 4 : i64, scratch_operands = 0 : i64, tpu.core_type = #tpu.core_type<tc>, window_params = [{transform_indices = @transform_0, window_bounds = array<i64: 256, 128>}, {transform_indices = @transform_1, window_bounds = array<i64: 256, 128>}, {transform_indices = @transform_2, window_bounds = array<i64: 1, 2, 8, 128>}]} {
    %c2_i32 = arith.constant 2 : i32
    %0 = arith.muli %arg0, %c2_i32 : i32
    %1 = arith.addi %0, %arg1 : i32
    %2 = arith.index_cast %1 : i32 to index
    %3 = memref.load %arg4[%2] : memref<4xi32, #tpu.memory_space<smem>>
    %c1_i32 = arith.constant 1 : i32
    %4 = arith.cmpi eq, %3, %c1_i32 : i32
    %5 = arith.extui %4 : i1 to i32
    %c0_i32 = arith.constant 0 : i32
    %6 = arith.cmpi ne, %5, %c0_i32 : i32
    scf.if %6 {
      %cst = arith.constant 0.000000e+00 : f32
      %12 = vector.broadcast %cst : f32 to vector<1x2x8x128xf32>
      %c0 = arith.constant 0 : index
      %c0_2 = arith.constant 0 : index
      %c0_3 = arith.constant 0 : index
      %c0_4 = arith.constant 0 : index
      %13 = vector.load %arg8[%c0, %c0_2, %c0_3, %c0_4] : memref<1x2x8x128xf32, #tpu.memory_space<vmem>>, vector<1x2x8x128xf32>
      tpu.vector_store %arg8[%c0, %c0_2, %c0_3, %c0_4], %12 {strides = array<i32>} : memref<1x2x8x128xf32, #tpu.memory_space<vmem>>, vector<1x2x8x128xf32>,
    } else {
    }
    %7 = arith.index_cast %1 : i32 to index
    %8 = memref.load %arg5[%7] : memref<4xi32, #tpu.memory_space<smem>>
    %c1_i32_0 = arith.constant 1 : i32
    %9 = arith.cmpi eq, %8, %c1_i32_0 : i32
    %10 = arith.extui %9 : i1 to i32
    %c0_i32_1 = arith.constant 0 : i32
    %11 = arith.cmpi ne, %10, %c0_i32_1 : i32
    scf.if %11 {
      %c0 = arith.constant 0 : index
      %c0_2 = arith.constant 0 : index
      %12 = vector.load %arg7[%c0, %c0_2] : memref<256x128xf32, #tpu.memory_space<vmem>>, vector<256x128xf32>
      %c0_3 = arith.constant 0 : index
      %c0_4 = arith.constant 0 : index
      %13 = vector.load %arg6[%c0_3, %c0_4] : memref<256x128xf32, #tpu.memory_space<vmem>>, vector<256x128xf32>
      %cst = arith.constant 1.000000e+00 : f32
      %14 = vector.broadcast %cst : f32 to vector<256x128xf32>
      %15 = arith.subf %12, %14 : vector<256x128xf32>
      %cst_5 = arith.constant 1.000000e+00 : f32
      %16 = vector.broadcast %cst_5 : f32 to vector<256x128xf32>
      %17 = arith.subf %12, %16 : vector<256x128xf32>
      %18 = arith.mulf %15, %17 : vector<256x128xf32>
      %19 = arith.mulf %13, %13 : vector<256x128xf32>
      %20 = vector.shape_cast %18 : vector<256x128xf32> to vector<32x8x128xf32>
      %cst_6 = arith.constant dense<0.000000e+00> : vector<8x128xf32>
      %21 = vector.multi_reduction <add>, %20, %cst_6 [0] : vector<32x8x128xf32> to vector<8x128xf32>
      %22 = vector.shape_cast %19 : vector<256x128xf32> to vector<32x8x128xf32>
      %cst_7 = arith.constant dense<0.000000e+00> : vector<8x128xf32>
      %23 = vector.multi_reduction <add>, %22, %cst_7 [0] : vector<32x8x128xf32> to vector<8x128xf32>
      %c0_8 = arith.constant 0 : index
      %c0_9 = arith.constant 0 : index
      %c0_10 = arith.constant 0 : index
      %c0_11 = arith.constant 0 : index
      %24 = vector.load %arg8[%c0_8, %c0_9, %c0_10, %c0_11] : memref<1x2x8x128xf32, #tpu.memory_space<vmem>>, vector<1x1x8x128xf32>
      %25 = vector.shape_cast %24 : vector<1x1x8x128xf32> to vector<8x128xf32>
      %26 = arith.addf %25, %21 : vector<8x128xf32>
      %c0_12 = arith.constant 0 : index
      %c0_13 = arith.constant 0 : index
      %c0_14 = arith.constant 0 : index
      %c0_15 = arith.constant 0 : index
      %27 = vector.load %arg8[%c0_12, %c0_13, %c0_14, %c0_15] : memref<1x2x8x128xf32, #tpu.memory_space<vmem>>, vector<1x1x8x128xf32>
      %28 = vector.shape_cast %27 : vector<1x1x8x128xf32> to vector<8x128xf32>
      %29 = vector.shape_cast %26 : vector<8x128xf32> to vector<1x1x8x128xf32>
      tpu.vector_store %arg8[%c0_12, %c0_13, %c0_14, %c0_15], %29 {strides = array<i32>} : memref<1x2x8x128xf32, #tpu.memory_space<vmem>>, vector<1x1x8x128xf32>,
      %c0_16 = arith.constant 0 : index
      %c1 = arith.constant 1 : index
      %c0_17 = arith.constant 0 : index
      %c0_18 = arith.constant 0 : index
      %30 = vector.load %arg8[%c0_16, %c1, %c0_17, %c0_18] : memref<1x2x8x128xf32, #tpu.memory_space<vmem>>, vector<1x1x8x128xf32>
      %31 = vector.shape_cast %30 : vector<1x1x8x128xf32> to vector<8x128xf32>
      %32 = arith.addf %31, %23 : vector<8x128xf32>
      %c0_19 = arith.constant 0 : index
      %c1_20 = arith.constant 1 : index
      %c0_21 = arith.constant 0 : index
      %c0_22 = arith.constant 0 : index
      %33 = vector.load %arg8[%c0_19, %c1_20, %c0_21, %c0_22] : memref<1x2x8x128xf32, #tpu.memory_space<vmem>>, vector<1x1x8x128xf32>
      %34 = vector.shape_cast %33 : vector<1x1x8x128xf32> to vector<8x128xf32>
      %35 = vector.shape_cast %32 : vector<8x128xf32> to vector<1x1x8x128xf32>
      tpu.vector_store %arg8[%c0_19, %c1_20, %c0_21, %c0_22], %35 {strides = array<i32>} : memref<1x2x8x128xf32, #tpu.memory_space<vmem>>, vector<1x1x8x128xf32>,
    } else {
    }
    return
  }
  func.func @transform_0(%arg0: i32, %arg1: i32, %arg2: memref<4xi32, #tpu.memory_space<smem>>, %arg3: memref<4xi32, #tpu.memory_space<smem>>, %arg4: memref<4xi32, #tpu.memory_space<smem>>, %arg5: memref<4xi32, #tpu.memory_space<smem>>) -> (i32, i32) {
    %c2_i32 = arith.constant 2 : i32
    %0 = arith.muli %arg0, %c2_i32 : i32
    %1 = arith.addi %0, %arg1 : i32
    %2 = arith.index_cast %1 : i32 to index
    %3 = memref.load %arg2[%2] : memref<4xi32, #tpu.memory_space<smem>>
    %c0_i32 = arith.constant 0 : i32
    %c0_i32_0 = arith.constant 0 : i32
    return %3, %c0_i32 : i32, i32
  }
  func.func @transform_1(%arg0: i32, %arg1: i32, %arg2: memref<4xi32, #tpu.memory_space<smem>>, %arg3: memref<4xi32, #tpu.memory_space<smem>>, %arg4: memref<4xi32, #tpu.memory_space<smem>>, %arg5: memref<4xi32, #tpu.memory_space<smem>>) -> (i32, i32) {
    %c2_i32 = arith.constant 2 : i32
    %0 = arith.muli %arg0, %c2_i32 : i32
    %1 = arith.addi %0, %arg1 : i32
    %2 = arith.index_cast %1 : i32 to index
    %3 = memref.load %arg2[%2] : memref<4xi32, #tpu.memory_space<smem>>
    %c0_i32 = arith.constant 0 : i32
    %c0_i32_0 = arith.constant 0 : i32
    return %3, %c0_i32 : i32, i32
  }
  func.func @transform_2(%arg0: i32, %arg1: i32, %arg2: memref<4xi32, #tpu.memory_space<smem>>, %arg3: memref<4xi32, #tpu.memory_space<smem>>, %arg4: memref<4xi32, #tpu.memory_space<smem>>, %arg5: memref<4xi32, #tpu.memory_space<smem>>) -> (i32, i32, i32, i32) {
    %c2_i32 = arith.constant 2 : i32
    %0 = arith.muli %arg0, %c2_i32 : i32
    %1 = arith.addi %0, %arg1 : i32
    %2 = arith.index_cast %1 : i32 to index
    %3 = memref.load %arg3[%2] : memref<4xi32, #tpu.memory_space<smem>>
    %c0_i32 = arith.constant 0 : i32
    %c0_i32_0 = arith.constant 0 : i32
    %c0_i32_1 = arith.constant 0 : i32
    %c0_i32_2 = arith.constant 0 : i32
    return %3, %c0_i32, %c0_i32_0, %c0_i32_1 : i32, i32, i32, i32
  }
}

</mosaic_0001>

<llo_original>
// kernel: tpu_custom_call.1
$region0: #{tpu_custom_call.1}
  #allocation0 [shape = 'u32[]', space=smem, size = 0x4, offset = 0x4, fixed_abs, tag = 'smem constant byte address 0x4 - core index']
  #allocation1 [shape = 'u32[144,128]{1,0:T(1,128)}', space=vmem, size = 0x12000, scoped, tag = 'internal scratch']
  #allocation2 [shape = 's32[1]{0}', space=sflag, size = 0x4, scoped, tag = 'scoped memory for tpu_custom_call.1']
  #allocation3 [shape = 'u8[512]{0}', space=smem, size = 0x200, scoped, tag = 'prefetched SMEM operand 0']
  #allocation4 [shape = 'u8[512]{0}', space=smem, size = 0x200, scoped, tag = 'prefetched SMEM operand 1']
  #allocation5 [shape = 'u8[512]{0}', space=smem, size = 0x200, scoped, tag = 'prefetched SMEM operand 2']
  #allocation6 [shape = 'u8[512]{0}', space=smem, size = 0x200, scoped, tag = 'prefetched SMEM operand 3']
  %s0 = inlined_call_operand.hbm [shape: s32[4], index: 0, kind: input, shape index: {}]
  %s1 = inlined_call_operand.vmem [shape: s32[4], index: 1, kind: input, shape index: {}]
  %s2 = inlined_call_operand.vmem [shape: s32[4], index: 2, kind: input, shape index: {}]
  %s3 = inlined_call_operand.vmem [shape: s32[4], index: 3, kind: input, shape index: {}]
  %s4 = inlined_call_operand.hbm [shape: f32[768,128], index: 4, kind: input, shape index: {}]
  %s5 = inlined_call_operand.hbm [shape: f32[768,128], index: 5, kind: input, shape index: {}]
  %s6 = inlined_call_operand.hbm [shape: f32[3,2,8,128], index: 6, kind: output, shape index: {}]
  %s7 = sld [smem:[#allocation0]]
  $region57: #{tpu_custom_call.1} parent=0
    _
  %s9 = ssub.s32 1, %s7
  %s10 = scalar_select 0, %s9, %s7
  %12 = dma.hbm_to_smem %s0, 16, [#allocation3], [#allocation2]
  %s13 = sshll.u32 %s1, 4
  %s14 = int_to_ptr.vmem [resolvable:$true] %s13
  %16 = dma.vmem_to_smem %s14, 16, [#allocation4], [#allocation2]
  %s17 = sshll.u32 %s2, 4
  %s18 = int_to_ptr.vmem [resolvable:$true] %s17
  %20 = dma.vmem_to_smem %s18, 16, [#allocation5], [#allocation2]
  %s21 = sshll.u32 %s3, 4
  %s22 = int_to_ptr.vmem [resolvable:$true] %s21
  %24 = dma.vmem_to_smem %s22, 16, [#allocation6], [#allocation2]
  %25 = dma.done [#allocation2], 64
  %26 = sfence
  $region1: #{tpu_custom_call.1} parent=0
    #allocation7 [shape = 'u8[262144]{0}', space=vmem, size = 0x40000, scoped, tag = 'input window, operand 4']
    #allocation8 [shape = 's32[2]{0}', space=sflag, size = 0x8, scoped, tag = 'scoped memory for tpu_custom_call.1']
    #allocation9 [shape = 's32[2]{0}', space=sflag, size = 0x8, scoped, tag = 'scoped memory for tpu_custom_call.1']
    #allocation10 [shape = 'u8[262144]{0}', space=vmem, size = 0x40000, scoped, tag = 'input window, operand 5']
    #allocation11 [shape = 's32[2]{0}', space=sflag, size = 0x8, scoped, tag = 'scoped memory for tpu_custom_call.1']
    #allocation12 [shape = 'u8[16384]{0}', space=vmem, size = 0x4000, scoped, tag = 'output window, operand 0']
    %27 = vsyncpa [#allocation8], 0
    %s28 = scalar_lea.sflag [#allocation8], 1
    %29 = vsyncpa %s28, 0
    %30 = vsyncpa [#allocation11], 0
    %s31 = scalar_lea.sflag [#allocation11], 1
    %32 = vsyncpa %s31, 0
    %33 = vsyncpa [#allocation9], 0
    %s34 = scalar_lea.sflag [#allocation9], 1
    %35 = vsyncpa %s34, 0
    loop: start=0, step=1, limit=6
    $region2: #{tpu_custom_call.1} parent=1 // loop_pre_header
      _
    $region3: #{tpu_custom_call.1} parent=1 // loop_header
      %s37 = sphi 0, %s41
      %p38 = scmp.ge.s32.totalorder %s37, 6
      %s44 = sphi 0, %s56
      %s45 = sphi 0, %s52
      %s46 = sphi 0, %s44
      %s47 = sphi 0, %s45
      %s48 = sphi 0, %s46
      %s49 = sphi 0, %s47
      %s65 = sphi 0, %s67
      %s68 = sphi 0, %s65
      %s69 = sphi 0, %s68
      %s85 = sphi 0, %s69
      %s97 = sphi 0, %s99
      %s100 = sphi 0, %s97
      %s101 = sphi 0, %s100
      %s117 = sphi 0, %s101
      %s129 = sphi 0, %s131
      %s132 = sphi 0, %s129
      %s133 = sphi 0, %s132
      %s149 = sphi 0, %s133
    $region4: #{tpu_custom_call.1} parent=1 // loop_header_branch
      %40 = sbr.rel (%p38) target = $region8
    $region5: #{tpu_custom_call.1} parent=1 // loop_body
      %s42 = ssub.s32 %s37, 1
      %s43 = ssub.s32 %s37, 2
      %s50 = sadd.s32 1, %s45
      %p51 = scmp.ge.s32.totalorder %s50, 2
      %s52 = scalar_select %p51, 0, %s50
      %s53 = sadd.s32 1, %s44
      %s54 = scalar_select %p51, %s53, %s44
      %p55 = scmp.ge.s32.totalorder %s54, 2
      %s56 = scalar_select %p55, 0, %s54
      %s57 = smul.u32 %s44, 2
      %s58 = sadd.s32 %s57, %s45
      %s59 = sld [smem:[#allocation3 + %s58]]
      %s60 = smul.u32 %s56, 2
      %s61 = sadd.s32 %s60, %s52
      %s62 = sld [smem:[#allocation3 + %s61]]
      %s63 = ssub.s32 %s59, %s62
      %p64 = scmp.eq.s32.totalorder %s63, 0
      %s66 = sadd.s32 %s65, 1
      %s67 = scalar_select %p64, %s65, %s66
      %p70 = pneg %p64
      %p71 = scmp.eq.s32.totalorder %s37, 3
      %p72 = por %p70, %p71
      %p73 = scmp.ne.s32.totalorder %s65, %s68
      %p74 = scmp.eq.s32.totalorder %s37, 0
      %p75 = por %p73, %p74
      %p76 = scmp.ne.s32.totalorder %s65, %s68
      %p77 = scmp.eq.s32.totalorder %s42, 3
      %p78 = por %p76, %p77
      %p79 = scmp.ne.s32.totalorder %s68, %s69
      %p80 = scmp.eq.s32.totalorder %s42, 0
      %p81 = por %p79, %p80
      %p82 = scmp.ne.s32.totalorder %s68, %s69
      %p83 = scmp.eq.s32.totalorder %s43, 3
      %p84 = por %p82, %p83
      %p86 = scmp.ne.s32.totalorder %s69, %s85
      %p87 = scmp.eq.s32.totalorder %s43, 0
      %p88 = por %p86, %p87
      %s89 = smul.u32 %s44, 2
      %s90 = sadd.s32 %s89, %s45
      %s91 = sld [smem:[#allocation3 + %s90]]
      %s92 = smul.u32 %s56, 2
      %s93 = sadd.s32 %s92, %s52
      %s94 = sld [smem:[#allocation3 + %s93]]
      %s95 = ssub.s32 %s91, %s94
      %p96 = scmp.eq.s32.totalorder %s95, 0
      %s98 = sadd.s32 %s97, 1
      %s99 = scalar_select %p96, %s97, %s98
      %p102 = pneg %p96
      %p103 = scmp.eq.s32.totalorder %s37, 3
      %p104 = por %p102, %p103
      %p105 = scmp.ne.s32.totalorder %s97, %s100
      %p106 = scmp.eq.s32.totalorder %s37, 0
      %p107 = por %p105, %p106
      %p108 = scmp.ne.s32.totalorder %s97, %s100
      %p109 = scmp.eq.s32.totalorder %s42, 3
      %p110 = por %p108, %p109
      %p111 = scmp.ne.s32.totalorder %s100, %s101
      %p112 = scmp.eq.s32.totalorder %s42, 0
      %p113 = por %p111, %p112
      %p114 = scmp.ne.s32.totalorder %s100, %s101
      %p115 = scmp.eq.s32.totalorder %s43, 3
      %p116 = por %p114, %p115
      %p118 = scmp.ne.s32.totalorder %s101, %s117
      %p119 = scmp.eq.s32.totalorder %s43, 0
      %p120 = por %p118, %p119
      %s121 = smul.u32 %s44, 2
      %s122 = sadd.s32 %s121, %s45
      %s123 = sld [smem:[#allocation4 + %s122]]
      %s124 = smul.u32 %s56, 2
      %s125 = sadd.s32 %s124, %s52
      %s126 = sld [smem:[#allocation4 + %s125]]
      %s127 = ssub.s32 %s123, %s126
      %p128 = scmp.eq.s32.totalorder %s127, 0
      %s130 = sadd.s32 %s129, 1
      %s131 = scalar_select %p128, %s129, %s130
      %p134 = pneg %p128
      %p135 = scmp.eq.s32.totalorder %s37, 3
      %p136 = por %p134, %p135
      %p137 = scmp.ne.s32.totalorder %s129, %s132
      %p138 = scmp.eq.s32.totalorder %s37, 0
      %p139 = por %p137, %p138
      %p140 = scmp.ne.s32.totalorder %s129, %s132
      %p141 = scmp.eq.s32.totalorder %s42, 3
      %p142 = por %p140, %p141
      %p143 = scmp.ne.s32.totalorder %s132, %s133
      %p144 = scmp.eq.s32.totalorder %s42, 0
      %p145 = por %p143, %p144
      %p146 = scmp.ne.s32.totalorder %s132, %s133
      %p147 = scmp.eq.s32.totalorder %s43, 3
      %p148 = por %p146, %p147
      %p150 = scmp.ne.s32.totalorder %s133, %s149
      %p151 = scmp.eq.s32.totalorder %s43, 0
      %p152 = por %p150, %p151
      %p153 = scmp.le.s32.totalorder 1, %s37
      %p154 = scmp.lt.s32.totalorder %s37, 5
      %p155 = pnand %p153, %p154
      %p156 = pneg %p155
      // Predicated region
      $region9: #{tpu_custom_call.1} parent=5 // pred_check
        _
      $region10: #{tpu_custom_call.1} parent=5 // pred_check_branch
        %158 = sbr.rel (%p155) target = $region12
      $region11: #{tpu_custom_call.1} parent=5 // pred_region
        %s159 = ssub.s32 %s37, 1
      $region12: #{tpu_custom_call.1} parent=5 // pred_fallthru
        _
      %p160 = scmp.lt.s32.totalorder %s37, 4
      // Predicated region
      $region13: #{tpu_custom_call.1} parent=5 // pred_check
        %p161 = pneg %p160
      $region14: #{tpu_custom_call.1} parent=5 // pred_check_branch
        %163 = sbr.rel (%p161) target = $region16
      $region15: #{tpu_custom_call.1} parent=5 // pred_region
        // Predicated region
        $region17: #{tpu_custom_call.1} parent=15 // pred_check
          %p164 = pneg %p75
        $region18: #{tpu_custom_call.1} parent=15 // pred_check_branch
          %166 = sbr.rel (%p164) target = $region20
        $region19: #{tpu_custom_call.1} parent=15 // pred_region
          %s167 = sand.u32 %s65, 1
          %s168 = scalar_lea.sflag [#allocation8], %s167
          %s169 = sand.u32 %s65, 1
          %s170 = smul.addr %s169, 256
          %s171 = scalar_lea.vmem [#allocation7], %s170
          %s172 = smul.u32 %s44, 2
          %s173 = sadd.s32 %s172, %s45
          %s174 = sld [smem:[#allocation3 + %s173]]
          %s175 = smul.u32 32, %s174
          %s177 = ssub.s32 4096, 4096
          %178 = vsyncadd %s168, %s177
          %s179 = smul.addr %s175, 128
          %s180 = scalar_lea.hbm %s4, %s179
          %s181 = sshll.u32 %s171, 4
          %s182 = int_to_ptr.vmem [resolvable:$true] %s181
          %187 = dma.hbm_to_vmem [thread:$0]  %s180, 4096, %s182, %s168, 128, 128, 8
        $region20: #{tpu_custom_call.1} parent=15 // pred_fallthru
          _
        // Predicated region
        $region21: #{tpu_custom_call.1} parent=15 // pred_check
          %p188 = pneg %p107
        $region22: #{tpu_custom_call.1} parent=15 // pred_check_branch
          %190 = sbr.rel (%p188) target = $region24
        $region23: #{tpu_custom_call.1} parent=15 // pred_region
          %s191 = sand.u32 %s97, 1
          %s192 = scalar_lea.sflag [#allocation11], %s191
          %s193 = sand.u32 %s97, 1
          %s194 = smul.addr %s193, 256
          %s195 = scalar_lea.vmem [#allocation10], %s194
          %s196 = smul.u32 %s44, 2
          %s197 = sadd.s32 %s196, %s45
          %s198 = sld [smem:[#allocation3 + %s197]]
          %s199 = smul.u32 32, %s198
          %s201 = ssub.s32 4096, 4096
          %202 = vsyncadd %s192, %s201
          %s203 = smul.addr %s199, 128
          %s204 = scalar_lea.hbm %s5, %s203
          %s205 = sshll.u32 %s195, 4
          %s206 = int_to_ptr.vmem [resolvable:$true] %s205
          %211 = dma.hbm_to_vmem [thread:$0]  %s204, 4096, %s206, %s192, 128, 128, 8
        $region24: #{tpu_custom_call.1} parent=15 // pred_fallthru
          _
      $region16: #{tpu_custom_call.1} parent=5 // pred_fallthru
        _
      %p212 = scmp.le.s32.totalorder 1, %s37
      %p213 = scmp.lt.s32.totalorder %s37, 5
      %p214 = pnand %p212, %p213
      %p215 = pneg %p214
      // Predicated region
      $region25: #{tpu_custom_call.1} parent=5 // pred_check
        _
      $region26: #{tpu_custom_call.1} parent=5 // pred_check_branch
        %217 = sbr.rel (%p214) target = $region28
      $region27: #{tpu_custom_call.1} parent=5 // pred_region
        %s218 = ssub.s32 %s37, 1
        %s219 = sand.u32 %s68, 1
        %s220 = scalar_lea.sflag [#allocation8], %s219
        %s221 = sand.u32 %s68, 1
        %s222 = smul.addr %s221, 256
        %s223 = scalar_lea.vmem [#allocation7], %s222
        // Predicated region
        $region29: #{tpu_custom_call.1} parent=27 // pred_check
          %p224 = pneg %p81
        $region30: #{tpu_custom_call.1} parent=27 // pred_check_branch
          %226 = sbr.rel (%p224) target = $region32
        $region31: #{tpu_custom_call.1} parent=27 // pred_region
          %227 = dma.done %s220, 4096
        $region32: #{tpu_custom_call.1} parent=27 // pred_fallthru
          _
        %s228 = sand.u32 %s100, 1
        %s229 = scalar_lea.sflag [#allocation11], %s228
        %s230 = sand.u32 %s100, 1
        %s231 = smul.addr %s230, 256
        %s232 = scalar_lea.vmem [#allocation10], %s231
        // Predicated region
        $region33: #{tpu_custom_call.1} parent=27 // pred_check
          %p233 = pneg %p113
        $region34: #{tpu_custom_call.1} parent=27 // pred_check_branch
          %235 = sbr.rel (%p233) target = $region36
        $region35: #{tpu_custom_call.1} parent=27 // pred_region
          %236 = dma.done %s229, 4096
        $region36: #{tpu_custom_call.1} parent=27 // pred_fallthru
          _
        %s237 = sand.u32 %s68, 1
        %s238 = scalar_lea.sflag [#allocation8], %s237
        %s239 = sand.u32 %s68, 1
        %s240 = smul.addr %s239, 256
        %s241 = scalar_lea.vmem [#allocation7], %s240
        %p242 = pneg %p81
        %p243 = pneg %p78
        %s244 = sand.u32 %s100, 1
        %s245 = scalar_lea.sflag [#allocation11], %s244
        %s246 = sand.u32 %s100, 1
        %s247 = smul.addr %s246, 256
        %s248 = scalar_lea.vmem [#allocation10], %s247
        %p249 = pneg %p113
        %p250 = pneg %p110
        %p251 = pneg %p145
        %p252 = pneg %p142
        %s253 = sand.u32 %s132, 1
        %s254 = scalar_lea.sflag [#allocation9], %s253
        %s255 = sand.u32 %s132, 1
        %s256 = smul.addr %s255, 16
        %s257 = scalar_lea.vmem [#allocation12], %s256
        %s258 = smul.u32 %s46, 2
        %s259 = sadd.s32 %s258, %s47
        %s260 = sld [smem:[#allocation3 + %s259]]
        %s261 = smul.u32 32, %s260
        %s262 = smul.u32 %s46, 2
        %s263 = sadd.s32 %s262, %s47
        %s264 = sld [smem:[#allocation3 + %s263]]
        %s265 = smul.u32 32, %s264
        %s266 = smul.u32 %s46, 2
        %s267 = sadd.s32 %s266, %s47
        %s268 = sld [smem:[#allocation4 + %s267]]
        %s269 = smul.u32 %s46, 2
        %s270 = sadd.s32 %s269, %s47
        %s271 = sld [smem:[#allocation5 + %s270]]
        %p272 = scmp.eq.s32.totalorder %s271, 1
        // Predicated region
        $region37: #{tpu_custom_call.1} parent=27 // pred_check
          %p273 = pneg %p272
        $region38: #{tpu_custom_call.1} parent=27 // pred_check_branch
          %275 = sbr.rel (%p273) target = $region40
        $region39: #{tpu_custom_call.1} parent=27 // pred_region
          %276 = vst [vmem:[%s257] sm:$0xff] 0.0
          %277 = vst [vmem:[%s257 + $0x8] sm:$0xff] 0.0
        $region40: #{tpu_custom_call.1} parent=27 // pred_fallthru
          _
        %s278 = sld [smem:[#allocation6 + %s270]]
        %p279 = scmp.eq.s32.totalorder %s278, 1
        // Predicated region
        $region41: #{tpu_custom_call.1} parent=27 // pred_check
          %p280 = pneg %p279
        $region42: #{tpu_custom_call.1} parent=27 // pred_check_branch
          %282 = sbr.rel (%p280) target = $region44
        $region43: #{tpu_custom_call.1} parent=27 // pred_region
          %v283 = vld [vmem:[%s232] sm:$0xff]
          %v284 = vld [vmem:[%s232 + $0x8] sm:$0xff]
          %v285 = vld [vmem:[%s232 + $0x10] sm:$0xff]
          %v286 = vld [vmem:[%s232 + $0x18] sm:$0xff]
          %v287 = vld [vmem:[%s232 + $0x20] sm:$0xff]
          %v288 = vld [vmem:[%s232 + $0x28] sm:$0xff]
          %v289 = vld [vmem:[%s232 + $0x30] sm:$0xff]
          %v290 = vld [vmem:[%s232 + $0x38] sm:$0xff]
          %v291 = vld [vmem:[%s232 + $0x40] sm:$0xff]
          %v292 = vld [vmem:[%s232 + $0x48] sm:$0xff]
          %v293 = vld [vmem:[%s232 + $0x50] sm:$0xff]
          %v294 = vld [vmem:[%s232 + $0x58] sm:$0xff]
          %v295 = vld [vmem:[%s232 + $0x60] sm:$0xff]
          %v296 = vld [vmem:[%s232 + $0x68] sm:$0xff]
          %v297 = vld [vmem:[%s232 + $0x70] sm:$0xff]
          %v298 = vld [vmem:[%s232 + $0x78] sm:$0xff]
          %v299 = vld [vmem:[%s232 + $0x80] sm:$0xff]
          %v300 = vld [vmem:[%s232 + $0x88] sm:$0xff]
          %v301 = vld [vmem:[%s232 + $0x90] sm:$0xff]
          %v302 = vld [vmem:[%s232 + $0x98] sm:$0xff]
          %v303 = vld [vmem:[%s232 + $0xa0] sm:$0xff]
          %v304 = vld [vmem:[%s232 + $0xa8] sm:$0xff]
          %v305 = vld [vmem:[%s232 + $0xb0] sm:$0xff]
          %v306 = vld [vmem:[%s232 + $0xb8] sm:$0xff]
          %v307 = vld [vmem:[%s232 + $0xc0] sm:$0xff]
          %v308 = vld [vmem:[%s232 + $0xc8] sm:$0xff]
          %v309 = vld [vmem:[%s232 + $0xd0] sm:$0xff]
          %v310 = vld [vmem:[%s232 + $0xd8] sm:$0xff]
          %v311 = vld [vmem:[%s232 + $0xe0] sm:$0xff]
          %v312 = vld [vmem:[%s232 + $0xe8] sm:$0xff]
          %v313 = vld [vmem:[%s232 + $0xf0] sm:$0xff]
          %v314 = vld [vmem:[%s232 + $0xf8] sm:$0xff]
          %v315 = vld [vmem:[%s223] sm:$0xff]
          %v316 = vld [vmem:[%s223 + $0x8] sm:$0xff]
          %v317 = vld [vmem:[%s223 + $0x10] sm:$0xff]
          %v318 = vld [vmem:[%s223 + $0x18] sm:$0xff]
          %v319 = vld [vmem:[%s223 + $0x20] sm:$0xff]
          %v320 = vld [vmem:[%s223 + $0x28] sm:$0xff]
          %v321 = vld [vmem:[%s223 + $0x30] sm:$0xff]
          %v322 = vld [vmem:[%s223 + $0x38] sm:$0xff]
          %v323 = vld [vmem:[%s223 + $0x40] sm:$0xff]
          %v324 = vld [vmem:[%s223 + $0x48] sm:$0xff]
          %v325 = vld [vmem:[%s223 + $0x50] sm:$0xff]
          %v326 = vld [vmem:[%s223 + $0x58] sm:$0xff]
          %v327 = vld [vmem:[%s223 + $0x60] sm:$0xff]
          %v328 = vld [vmem:[%s223 + $0x68] sm:$0xff]
          %v329 = vld [vmem:[%s223 + $0x70] sm:$0xff]
          %v330 = vld [vmem:[%s223 + $0x78] sm:$0xff]
          %v331 = vld [vmem:[%s223 + $0x80] sm:$0xff]
          %v332 = vld [vmem:[%s223 + $0x88] sm:$0xff]
          %v333 = vld [vmem:[%s223 + $0x90] sm:$0xff]
          %v334 = vld [vmem:[%s223 + $0x98] sm:$0xff]
          %v335 = vld [vmem:[%s223 + $0xa0] sm:$0xff]
          %v336 = vld [vmem:[%s223 + $0xa8] sm:$0xff]
          %v337 = vld [vmem:[%s223 + $0xb0] sm:$0xff]
          %v338 = vld [vmem:[%s223 + $0xb8] sm:$0xff]
          %v339 = vld [vmem:[%s223 + $0xc0] sm:$0xff]
          %v340 = vld [vmem:[%s223 + $0xc8] sm:$0xff]
          %v341 = vld [vmem:[%s223 + $0xd0] sm:$0xff]
          %v342 = vld [vmem:[%s223 + $0xd8] sm:$0xff]
          %v343 = vld [vmem:[%s223 + $0xe0] sm:$0xff]
          %v344 = vld [vmem:[%s223 + $0xe8] sm:$0xff]
          %v345 = vld [vmem:[%s223 + $0xf0] sm:$0xff]
          %v346 = vld [vmem:[%s223 + $0xf8] sm:$0xff]
          %v347 = vsub.f32 %v283, 1.0
          %v348 = vsub.f32 %v284, 1.0
          %v349 = vsub.f32 %v285, 1.0
          %v350 = vsub.f32 %v286, 1.0
          %v351 = vsub.f32 %v287, 1.0
          %v352 = vsub.f32 %v288, 1.0
          %v353 = vsub.f32 %v289, 1.0
          %v354 = vsub.f32 %v290, 1.0
          %v355 = vsub.f32 %v291, 1.0
          %v356 = vsub.f32 %v292, 1.0
          %v357 = vsub.f32 %v293, 1.0
          %v358 = vsub.f32 %v294, 1.0
          %v359 = vsub.f32 %v295, 1.0
          %v360 = vsub.f32 %v296, 1.0
          %v361 = vsub.f32 %v297, 1.0
          %v362 = vsub.f32 %v298, 1.0
          %v363 = vsub.f32 %v299, 1.0
          %v364 = vsub.f32 %v300, 1.0
          %v365 = vsub.f32 %v301, 1.0
          %v366 = vsub.f32 %v302, 1.0
          %v367 = vsub.f32 %v303, 1.0
          %v368 = vsub.f32 %v304, 1.0
          %v369 = vsub.f32 %v305, 1.0
          %v370 = vsub.f32 %v306, 1.0
          %v371 = vsub.f32 %v307, 1.0
          %v372 = vsub.f32 %v308, 1.0
          %v373 = vsub.f32 %v309, 1.0
          %v374 = vsub.f32 %v310, 1.0
          %v375 = vsub.f32 %v311, 1.0
          %v376 = vsub.f32 %v312, 1.0
          %v377 = vsub.f32 %v313, 1.0
          %v378 = vsub.f32 %v314, 1.0
          %v379 = vmul.f32 %v347, %v347
          %v380 = vmul.f32 %v348, %v348
          %v381 = vmul.f32 %v349, %v349
          %v382 = vmul.f32 %v350, %v350
          %v383 = vmul.f32 %v351, %v351
          %v384 = vmul.f32 %v352, %v352
          %v385 = vmul.f32 %v353, %v353
          %v386 = vmul.f32 %v354, %v354
          %v387 = vmul.f32 %v355, %v355
          %v388 = vmul.f32 %v356, %v356
          %v389 = vmul.f32 %v357, %v357
          %v390 = vmul.f32 %v358, %v358
          %v391 = vmul.f32 %v359, %v359
          %v392 = vmul.f32 %v360, %v360
          %v393 = vmul.f32 %v361, %v361
          %v394 = vmul.f32 %v362, %v362
          %v395 = vmul.f32 %v363, %v363
          %v396 = vmul.f32 %v364, %v364
          %v397 = vmul.f32 %v365, %v365
          %v398 = vmul.f32 %v366, %v366
          %v399 = vmul.f32 %v367, %v367
          %v400 = vmul.f32 %v368, %v368
          %v401 = vmul.f32 %v369, %v369
          %v402 = vmul.f32 %v370, %v370
          %v403 = vmul.f32 %v371, %v371
          %v404 = vmul.f32 %v372, %v372
          %v405 = vmul.f32 %v373, %v373
          %v406 = vmul.f32 %v374, %v374
          %v407 = vmul.f32 %v375, %v375
          %v408 = vmul.f32 %v376, %v376
          %v409 = vmul.f32 %v377, %v377
          %v410 = vmul.f32 %v378, %v378
          %v411 = vmul.f32 %v315, %v315
          %v412 = vmul.f32 %v316, %v316
          %v413 = vmul.f32 %v317, %v317
          %v414 = vmul.f32 %v318, %v318
          %v415 = vmul.f32 %v319, %v319
          %v416 = vmul.f32 %v320, %v320
          %v417 = vmul.f32 %v321, %v321
          %v418 = vmul.f32 %v322, %v322
          %v419 = vmul.f32 %v323, %v323
          %v420 = vmul.f32 %v324, %v324
          %v421 = vmul.f32 %v325, %v325
          %v422 = vmul.f32 %v326, %v326
          %v423 = vmul.f32 %v327, %v327
          %v424 = vmul.f32 %v328, %v328
          %v425 = vmul.f32 %v329, %v329
          %v426 = vmul.f32 %v330, %v330
          %v427 = vmul.f32 %v331, %v331
          %v428 = vmul.f32 %v332, %v332
          %v429 = vmul.f32 %v333, %v333
          %v430 = vmul.f32 %v334, %v334
          %v431 = vmul.f32 %v335, %v335
          %v432 = vmul.f32 %v336, %v336
          %v433 = vmul.f32 %v337, %v337
          %v434 = vmul.f32 %v338, %v338
          %v435 = vmul.f32 %v339, %v339
          %v436 = vmul.f32 %v340, %v340
          %v437 = vmul.f32 %v341, %v341
          %v438 = vmul.f32 %v342, %v342
          %v439 = vmul.f32 %v343, %v343
          %v440 = vmul.f32 %v344, %v344
          %v441 = vmul.f32 %v345, %v345
          %v442 = vmul.f32 %v346, %v346
          %v443 = vadd.f32 %v379, %v380
          %v444 = vadd.f32 %v443, %v381
          %v445 = vadd.f32 %v444, %v382
          %v446 = vadd.f32 %v445, %v383
          %v447 = vadd.f32 %v446, %v384
          %v448 = vadd.f32 %v447, %v385
          %v449 = vadd.f32 %v448, %v386
          %v450 = vadd.f32 %v449, %v387
          %v451 = vadd.f32 %v450, %v388
          %v452 = vadd.f32 %v451, %v389
          %v453 = vadd.f32 %v452, %v390
          %v454 = vadd.f32 %v453, %v391
          %v455 = vadd.f32 %v454, %v392
          %v456 = vadd.f32 %v455, %v393
          %v457 = vadd.f32 %v456, %v394
          %v458 = vadd.f32 %v457, %v395
          %v459 = vadd.f32 %v458, %v396
          %v460 = vadd.f32 %v459, %v397
          %v461 = vadd.f32 %v460, %v398
          %v462 = vadd.f32 %v461, %v399
          %v463 = vadd.f32 %v462, %v400
          %v464 = vadd.f32 %v463, %v401
          %v465 = vadd.f32 %v464, %v402
          %v466 = vadd.f32 %v465, %v403
          %v467 = vadd.f32 %v466, %v404
          %v468 = vadd.f32 %v467, %v405
          %v469 = vadd.f32 %v468, %v406
          %v470 = vadd.f32 %v469, %v407
          %v471 = vadd.f32 %v470, %v408
          %v472 = vadd.f32 %v471, %v409
          %v473 = vadd.f32 %v472, %v410
          %v474 = vadd.f32 %v411, %v412
          %v475 = vadd.f32 %v474, %v413
          %v476 = vadd.f32 %v475, %v414
          %v477 = vadd.f32 %v476, %v415
          %v478 = vadd.f32 %v477, %v416
          %v479 = vadd.f32 %v478, %v417
          %v480 = vadd.f32 %v479, %v418
          %v481 = vadd.f32 %v480, %v419
          %v482 = vadd.f32 %v481, %v420
          %v483 = vadd.f32 %v482, %v421
          %v484 = vadd.f32 %v483, %v422
          %v485 = vadd.f32 %v484, %v423
          %v486 = vadd.f32 %v485, %v424
          %v487 = vadd.f32 %v486, %v425
          %v488 = vadd.f32 %v487, %v426
          %v489 = vadd.f32 %v488, %v427
          %v490 = vadd.f32 %v489, %v428
          %v491 = vadd.f32 %v490, %v429
          %v492 = vadd.f32 %v491, %v430
          %v493 = vadd.f32 %v492, %v431
          %v494 = vadd.f32 %v493, %v432
          %v495 = vadd.f32 %v494, %v433
          %v496 = vadd.f32 %v495, %v434
          %v497 = vadd.f32 %v496, %v435
          %v498 = vadd.f32 %v497, %v436
          %v499 = vadd.f32 %v498, %v437
          %v500 = vadd.f32 %v499, %v438
          %v501 = vadd.f32 %v500, %v439
          %v502 = vadd.f32 %v501, %v440
          %v503 = vadd.f32 %v502, %v441
          %v504 = vadd.f32 %v503, %v442
          %v505 = vld [vmem:[%s257] sm:$0xff]
          %v506 = vadd.f32 %v505, %v473
          %507 = vst [vmem:[%s257] sm:$0xff] %v506
          %s508 = scalar_lea.vmem %s257, 8 [#allocation12]
          %v509 = vld [vmem:[%s508] sm:$0xff]
          %v510 = vadd.f32 %v509, %v504
          %511 = vst [vmem:[%s508] sm:$0xff] %v510
        $region44: #{tpu_custom_call.1} parent=27 // pred_fallthru
          _
        %s512 = sand.u32 %s132, 1
        %s513 = scalar_lea.sflag [#allocation9], %s512
        %s514 = sand.u32 %s132, 1
        %s515 = smul.addr %s514, 16
        %s516 = scalar_lea.vmem [#allocation12], %s515
        // Predicated region
        $region45: #{tpu_custom_call.1} parent=27 // pred_check
          %p517 = pneg %p142
        $region46: #{tpu_custom_call.1} parent=27 // pred_check_branch
          %519 = sbr.rel (%p517) target = $region48
        $region47: #{tpu_custom_call.1} parent=27 // pred_region
          %s520 = smul.u32 %s46, 2
          %s521 = sadd.s32 %s520, %s47
          %s522 = sld [smem:[#allocation4 + %s521]]
          %s524 = ssub.s32 256, 256
          %525 = vsyncadd %s513, %s524
          %s526 = smul.addr %s522, 2
          %s527 = smul.addr %s526, 128
          %s528 = scalar_lea.hbm %s6, %s527
          %s529 = sshll.u32 %s516, 4
          %s530 = int_to_ptr.vmem [resolvable:$true] %s529
          %535 = dma.vmem_to_hbm [thread:$0]  %s530, 256, %s528, %s513, 128, 128, 8
        $region48: #{tpu_custom_call.1} parent=27 // pred_fallthru
          _
      $region28: #{tpu_custom_call.1} parent=5 // pred_fallthru
        _
      %p536 = scmp.le.s32.totalorder 2, %s37
      // Predicated region
      $region49: #{tpu_custom_call.1} parent=5 // pred_check
        %p537 = pneg %p536
      $region50: #{tpu_custom_call.1} parent=5 // pred_check_branch
        %539 = sbr.rel (%p537) target = $region52
      $region51: #{tpu_custom_call.1} parent=5 // pred_region
        %s540 = ssub.s32 %s37, 2
        // Predicated region
        $region53: #{tpu_custom_call.1} parent=51 // pred_check
          %p541 = pneg %p148
        $region54: #{tpu_custom_call.1} parent=51 // pred_check_branch
          %543 = sbr.rel (%p541) target = $region56
        $region55: #{tpu_custom_call.1} parent=51 // pred_region
          %s544 = sand.u32 %s133, 1
          %s545 = scalar_lea.sflag [#allocation9], %s544
          %s546 = sand.u32 %s133, 1
          %s547 = smul.addr %s546, 16
          %s548 = scalar_lea.vmem [#allocation12], %s547
          %549 = dma.done %s545, 256
        $region56: #{tpu_custom_call.1} parent=51 // pred_fallthru
          _
      $region52: #{tpu_custom_call.1} parent=5 // pred_fallthru
        _
    $region6: #{tpu_custom_call.1} parent=1 // loop_footer
      %s41 = sadd.s32 1, %s37
    $region7: #{tpu_custom_call.1} parent=1 // loop_footer_branch
      %36 = sbr.rel target = $region3
    $region8: #{tpu_custom_call.1} parent=1 // loop_exit
      _
    %550 = vsyncpa [#allocation8], 1
    %s551 = scalar_lea.sflag [#allocation8], 1
    %552 = vsyncpa %s551, 1
    %553 = vsyncpa [#allocation11], 1
    %s554 = scalar_lea.sflag [#allocation11], 1
    %555 = vsyncpa %s554, 1
    %556 = vsyncpa [#allocation9], 1
    %s557 = scalar_lea.sflag [#allocation9], 1
    %558 = vsyncpa %s557, 1

</llo_original>
